<compile_context>
chip_gen: v7x
topology: tpu7x:2x2x1
jax: 0.10.0
libtpu: 0.0.40
codegen_flags: <defaults>
</compile_context>

<pallas_src>
import functools

import jax
import jax.numpy as jnp
from jax import lax
from jax.experimental import pallas as pl
from jax.experimental.pallas import tpu as pltpu

EPS = 1e-5       # BatchNorm1d eps (PyTorch default), training-mode batch stats.
_LANE = 128      # vreg lane width: outputs are emitted lane-dense.


def _batchnorm_train(h, gamma, beta):
    # BatchNorm1d in training mode: biased batch statistics over dim 0.
    mu = jnp.mean(h, axis=0, keepdims=True)
    var = jnp.mean((h - mu) * (h - mu), axis=0, keepdims=True)
    return (h - mu) * lax.rsqrt(var + EPS) * gamma + beta


def _context_net(x, w1, g1, be1, w2, g2, be2, w3, b3):
    # b1/b2 intentionally omitted: bias-before-BatchNorm cancels exactly.
    h = jnp.dot(x, w1, preferred_element_type=jnp.float32)
    h = jnp.maximum(_batchnorm_train(h, g1, be1), 0.0)
    h = jnp.dot(h, w2, preferred_element_type=jnp.float32)
    h = jnp.maximum(_batchnorm_train(h, g2, be2), 0.0)
    ctx = jnp.dot(h, w3, preferred_element_type=jnp.float32) + b3    # [N, CVP]
    return jnp.mean(ctx, axis=0, keepdims=True)                      # [1, CVP]


def _lr_context_kernel(x_ref, w1_ref, g1_ref, be1_ref, w2_ref, g2_ref, be2_ref,
                       w3_ref, b3_ref, wfc_c_ref, wfc_x_ref, bfc_ref,
                       pred_ref, avg_ref):
    x = x_ref[...]                                                   # [N, D]
    avg = _context_net(x, w1_ref[...], g1_ref[...], be1_ref[...],
                       w2_ref[...], g2_ref[...], be2_ref[...],
                       w3_ref[...], b3_ref[...])                     # [1, CVP]
    avg_ref[...] = avg                                               # lane-dense store

    # fc1 head on the VPU/XLU: a 1-wide matmul would waste a full padded MXU
    # push, so compute it as elementwise mul + lane reduction instead.
    ctx_term = jnp.sum(avg * wfc_c_ref[...], axis=-1, keepdims=True)   # [1, 1]
    pred = jnp.sum(x * wfc_x_ref[...], axis=-1, keepdims=True)         # [N, 1]
    full = pred + ctx_term + bfc_ref[...]                              # [N, 1]
    # Broadcast across lanes so the store is a full unmasked vst (a [N,1]
    # store would be masked); the wrapper slices lane 0.
    pred_ref[...] = jnp.broadcast_to(full, pred_ref.shape)


def _lr_context_kernel_ctx_only(x_ref, w1_ref, g1_ref, be1_ref, w2_ref, g2_ref,
                                be2_ref, w3_ref, b3_ref, avg_ref):
    avg_ref[...] = _context_net(x_ref[...], w1_ref[...], g1_ref[...], be1_ref[...],
                                w2_ref[...], g2_ref[...], be2_ref[...],
                                w3_ref[...], b3_ref[...])


def _round_up(v, m):
    return ((v + m - 1) // m) * m


def lr_context_forward(x, params, context_only=False):
    """Pallas TPU implementation of LR_Context.forward.

    x: [N, input_size], or [B, N, input_size] to fuse B independent
       minibatches into a single pallas_call (BN statistics are computed per
       minibatch, identical to calling the module once per minibatch).
    context_only: static Python bool mirroring the PyTorch flag.
    """
    squeeze = x.ndim == 2
    if squeeze:
        x = x[None]
    x = x.astype(jnp.float32)
    B, N, D = x.shape
    CV = params["w3"].shape[1]
    CVP = _round_up(CV, _LANE)          # lane-dense context width

    # Zero-pad the context head to a full 128-lane slab so ctx/avg tiles and
    # the avg store are lane-dense; padded columns stay exactly 0 end-to-end.
    w3p = jnp.pad(params["w3"], ((0, 0), (0, CVP - CV)))
    b3p = jnp.pad(params["b3"], ((0, 0), (0, CVP - CV)))

    weights = (params["w1"], params["g1"], params["be1"],
               params["w2"], params["g2"], params["be2"], w3p, b3p)

    def _wspec(a):
        # Whole-array block with a constant block index -> weight stays
        # VMEM-resident across the whole batch grid (DMA'd once).
        return pl.BlockSpec(a.shape, lambda b: (0, 0))

    x_spec = pl.BlockSpec((None, N, D), lambda b: (b, 0, 0))
    avg_spec = pl.BlockSpec((None, 1, CVP), lambda b: (b, 0, 0))

    # NOTE: for N large enough to blow this budget, switch to a two-pass BN
    # (tile N, accumulate sum/sumsq in VMEM scratch) instead of raising it —
    # v7x only has 64 MiB of physical VMEM.
    compiler_params = pltpu.CompilerParams(
        dimension_semantics=("parallel",),       # independent minibatches -> megacore
        vmem_limit_bytes=32 * 1024 * 1024,
    )

    if context_only:
        avg_out = pl.pallas_call(
            _lr_context_kernel_ctx_only,
            grid=(B,),
            in_specs=[x_spec] + [_wspec(a) for a in weights],
            out_specs=avg_spec,
            out_shape=jax.ShapeDtypeStruct((B, 1, CVP), jnp.float32),
            compiler_params=compiler_params,
        )(x, *weights)
        avg = avg_out[:, 0, :CV]
        return avg[0] if squeeze else avg

    # fc1 weights in row layout for the VPU head; cat order is (context, x).
    wfc_c_row = jnp.pad(params["wfc_c"].T, ((0, 0), (0, CVP - CV)))   # [1, CVP]
    wfc_x_row = params["wfc_x"].T                                     # [1, D]
    bfc = params["bfc"].reshape(1, 1)
    head = (wfc_c_row, wfc_x_row, bfc)

    pred_out, avg_out = pl.pallas_call(
        _lr_context_kernel,
        grid=(B,),
        in_specs=[x_spec] + [_wspec(a) for a in weights + head],
        out_specs=(pl.BlockSpec((None, N, _LANE), lambda b: (b, 0, 0)), avg_spec),
        out_shape=(jax.ShapeDtypeStruct((B, N, _LANE), jnp.float32),
                   jax.ShapeDtypeStruct((B, 1, CVP), jnp.float32)),
        compiler_params=compiler_params,
    )(x, *weights, *head)

    pred = pred_out[:, :, 0:1]      # [B, N, 1]
    avg = avg_out[:, 0, :CV]        # [B, CV]
    if squeeze:
        return pred[0], avg[0]
    return pred, avg


def init_params(key, input_size, context_vector_size, context_hidden_size):
    """Deterministic synthetic parameter init (PyTorch-like uniform fan-in scaling)."""
    ks = jax.random.split(key, 8)

    def linear(k, fan_in, fan_out):
        bound = 1.0 / jnp.sqrt(jnp.float32(fan_in))
        kw, kb = jax.random.split(k)
        w = jax.random.uniform(kw, (fan_in, fan_out), jnp.float32, -bound, bound)
        b = jax.random.uniform(kb, (1, fan_out), jnp.float32, -bound, bound)
        return w, b

    D, H, CV = input_size, context_hidden_size, context_vector_size

    w1, b1 = linear(ks[0], D, H)
    w2, b2 = linear(ks[1], H, H)
    w3, b3 = linear(ks[2], H, CV)
    # fc1 on [context | x]  ->  split weight into the two column groups.
    wfc_full, bfc = linear(ks[3], CV + D, 1)
    wfc_c = wfc_full[:CV, :]
    wfc_x = wfc_full[CV:, :]

    # BatchNorm1d affine params (PyTorch init: weight=1, bias=0).
    g1 = jnp.ones((1, H), jnp.float32)
    be1 = jnp.zeros((1, H), jnp.float32)
    g2 = jnp.ones((1, H), jnp.float32)
    be2 = jnp.zeros((1, H), jnp.float32)

    # b1/b2 are kept only for the reference check (the kernel provably does
    # not need them because of the following BatchNorm).
    return dict(
        w1=w1, b1=b1, g1=g1, be1=be1,
        w2=w2, b2=b2, g2=g2, be2=be2,
        w3=w3, b3=b3,
        wfc_c=wfc_c, wfc_x=wfc_x, bfc=bfc,
    )


def ref_forward(x, p):
    """Pure-JAX f32 reference matching the PyTorch module (includes b1/b2)."""
    def bn(h, g, be):
        mu = h.mean(0, keepdims=True)
        var = ((h - mu) ** 2).mean(0, keepdims=True)
        return (h - mu) / jnp.sqrt(var + EPS) * g + be

    h = jnp.maximum(bn(x @ p["w1"] + p["b1"], p["g1"], p["be1"]), 0.0)
    h = jnp.maximum(bn(h @ p["w2"] + p["b2"], p["g2"], p["be2"]), 0.0)
    ctx = h @ p["w3"] + p["b3"]
    avg = ctx.mean(0)
    pred = avg @ p["wfc_c"] + x @ p["wfc_x"] + p["bfc"]
    return pred, avg


if __name__ == "__main__":
    key = jax.random.PRNGKey(0)
    k_param, k_x, k_xb = jax.random.split(key, 3)

    N = 8                      # batch
    input_size = 16
    context_vector_size = 4
    context_hidden_size = 32

    params = init_params(k_param, input_size, context_vector_size, context_hidden_size)
    x = jax.random.normal(k_x, (N, input_size), jnp.float32)

    fwd = jax.jit(functools.partial(lr_context_forward, context_only=False))
    prediction, avg_ctx = jax.block_until_ready(fwd(x, params))

    pred_ref, avg_ref = ref_forward(x, params)
    assert prediction.shape == (N, 1)
    assert avg_ctx.shape == (context_vector_size,)
    assert jnp.allclose(prediction, pred_ref, atol=1e-4, rtol=1e-4)
    assert jnp.allclose(avg_ctx, avg_ref, atol=1e-4, rtol=1e-4)

    # context_only branch (trimmed kernel: no fc1 inputs, no prediction output).
    ctx_fwd = jax.jit(functools.partial(lr_context_forward, context_only=True))
    avg_only = jax.block_until_ready(ctx_fwd(x, params))
    assert jnp.allclose(avg_only, avg_ref, atol=1e-4, rtol=1e-4)

    # Batched path: several independent minibatches in one pallas_call
    # (grid=(B,), weights VMEM-resident, megacore-parallel over B).
    B = 3
    xb = jax.random.normal(k_xb, (B, N, input_size), jnp.float32)
    pred_b, avg_b = jax.block_until_ready(fwd(xb, params))
    assert pred_b.shape == (B, N, 1) and avg_b.shape == (B, context_vector_size)
    for b in range(B):
        pr, ar = ref_forward(xb[b], params)
        assert jnp.allclose(pred_b[b], pr, atol=1e-4, rtol=1e-4)
        assert jnp.allclose(avg_b[b], ar, atol=1e-4, rtol=1e-4)

    print("KERNEL_OK")
</pallas_src>

<mosaic_0001>
module attributes {stable_mosaic.version = 11 : i64} {
  func.func @_lr_context_kernel(%arg0: i32, %arg1: memref<1x8x16xf32, #tpu.memory_space<vmem>>, %arg2: memref<16x32xf32, #tpu.memory_space<vmem>>, %arg3: memref<1x32xf32, #tpu.memory_space<vmem>>, %arg4: memref<1x32xf32, #tpu.memory_space<vmem>>, %arg5: memref<32x32xf32, #tpu.memory_space<vmem>>, %arg6: memref<1x32xf32, #tpu.memory_space<vmem>>, %arg7: memref<1x32xf32, #tpu.memory_space<vmem>>, %arg8: memref<32x128xf32, #tpu.memory_space<vmem>>, %arg9: memref<1x128xf32, #tpu.memory_space<vmem>>, %arg10: memref<1x128xf32, #tpu.memory_space<vmem>>, %arg11: memref<1x16xf32, #tpu.memory_space<vmem>>, %arg12: memref<1x1xf32, #tpu.memory_space<vmem>>, %arg13: memref<1x8x128xf32, #tpu.memory_space<vmem>>, %arg14: memref<1x1x128xf32, #tpu.memory_space<vmem>>) attributes {dimension_semantics = [#tpu.dimension_semantics<parallel>], iteration_bounds = array<i64: 1>, scalar_prefetch = 0 : i64, scratch_operands = 0 : i64, tpu.core_type = #tpu.core_type<tc>, window_params = [{transform_indices = @transform_0, window_bounds = array<i64: 1, 8, 16>}, {pipeline_mode = #tpu.pipeline_mode<synchronous>, transform_indices = @transform_1, window_bounds = array<i64: 16, 32>}, {pipeline_mode = #tpu.pipeline_mode<synchronous>, transform_indices = @transform_2, window_bounds = array<i64: 1, 32>}, {pipeline_mode = #tpu.pipeline_mode<synchronous>, transform_indices = @transform_3, window_bounds = array<i64: 1, 32>}, {pipeline_mode = #tpu.pipeline_mode<synchronous>, transform_indices = @transform_4, window_bounds = array<i64: 32, 32>}, {pipeline_mode = #tpu.pipeline_mode<synchronous>, transform_indices = @transform_5, window_bounds = array<i64: 1, 32>}, {pipeline_mode = #tpu.pipeline_mode<synchronous>, transform_indices = @transform_6, window_bounds = array<i64: 1, 32>}, {pipeline_mode = #tpu.pipeline_mode<synchronous>, transform_indices = @transform_7, window_bounds = array<i64: 32, 128>}, {pipeline_mode = #tpu.pipeline_mode<synchronous>, transform_indices = @transform_8, window_bounds = array<i64: 1, 128>}, {pipeline_mode = #tpu.pipeline_mode<synchronous>, transform_indices = @transform_9, window_bounds = array<i64: 1, 128>}, {pipeline_mode = #tpu.pipeline_mode<synchronous>, transform_indices = @transform_10, window_bounds = array<i64: 1, 16>}, {pipeline_mode = #tpu.pipeline_mode<synchronous>, transform_indices = @transform_11, window_bounds = array<i64: 1, 1>}, {transform_indices = @transform_12, window_bounds = array<i64: 1, 8, 128>}, {transform_indices = @transform_13, window_bounds = array<i64: 1, 1, 128>}]} {
    %c0 = arith.constant 0 : index
    %c0_0 = arith.constant 0 : index
    %c0_1 = arith.constant 0 : index
    %0 = vector.load %arg1[%c0, %c0_0, %c0_1] : memref<1x8x16xf32, #tpu.memory_space<vmem>>, vector<1x8x16xf32>
    %1 = vector.shape_cast %0 : vector<1x8x16xf32> to vector<8x16xf32>
    %c0_2 = arith.constant 0 : index
    %c0_3 = arith.constant 0 : index
    %2 = vector.load %arg2[%c0_2, %c0_3] : memref<16x32xf32, #tpu.memory_space<vmem>>, vector<16x32xf32>
    %c0_4 = arith.constant 0 : index
    %c0_5 = arith.constant 0 : index
    %3 = vector.load %arg3[%c0_4, %c0_5] : memref<1x32xf32, #tpu.memory_space<vmem>>, vector<1x32xf32>
    %c0_6 = arith.constant 0 : index
    %c0_7 = arith.constant 0 : index
    %4 = vector.load %arg4[%c0_6, %c0_7] : memref<1x32xf32, #tpu.memory_space<vmem>>, vector<1x32xf32>
    %c0_8 = arith.constant 0 : index
    %c0_9 = arith.constant 0 : index
    %5 = vector.load %arg5[%c0_8, %c0_9] : memref<32x32xf32, #tpu.memory_space<vmem>>, vector<32x32xf32>
    %c0_10 = arith.constant 0 : index
    %c0_11 = arith.constant 0 : index
    %6 = vector.load %arg6[%c0_10, %c0_11] : memref<1x32xf32, #tpu.memory_space<vmem>>, vector<1x32xf32>
    %c0_12 = arith.constant 0 : index
    %c0_13 = arith.constant 0 : index
    %7 = vector.load %arg7[%c0_12, %c0_13] : memref<1x32xf32, #tpu.memory_space<vmem>>, vector<1x32xf32>
    %c0_14 = arith.constant 0 : index
    %c0_15 = arith.constant 0 : index
    %8 = vector.load %arg8[%c0_14, %c0_15] : memref<32x128xf32, #tpu.memory_space<vmem>>, vector<32x128xf32>
    %c0_16 = arith.constant 0 : index
    %c0_17 = arith.constant 0 : index
    %9 = vector.load %arg9[%c0_16, %c0_17] : memref<1x128xf32, #tpu.memory_space<vmem>>, vector<1x128xf32>
    %cst = arith.constant dense<0.000000e+00> : vector<8x32xf32>
    %10 = tpu.matmul %1, %2, %cst {dimension_numbers = #tpu.dot_dimension_numbers<[1], [0], [0], [1], [0, 0, 1, 1], [], []>} : vector<8x16xf32>, vector<16x32xf32>, vector<8x32xf32> -> vector<8x32xf32>
    %cst_18 = arith.constant dense<0.000000e+00> : vector<32xf32>
    %11 = vector.multi_reduction <add>, %10, %cst_18 [0] : vector<8x32xf32> to vector<32xf32>
    %12 = vector.shape_cast %11 : vector<32xf32> to vector<1x32xf32>
    %cst_19 = arith.constant 8.000000e+00 : f32
    %13 = vector.broadcast %cst_19 : f32 to vector<1x32xf32>
    %14 = arith.divf %12, %13 : vector<1x32xf32>
    %15 = vector.broadcast %14 : vector<1x32xf32> to vector<8x32xf32>
    %16 = arith.subf %10, %15 : vector<8x32xf32>
    %17 = vector.broadcast %14 : vector<1x32xf32> to vector<8x32xf32>
    %18 = arith.subf %10, %17 : vector<8x32xf32>
    %19 = arith.mulf %16, %18 : vector<8x32xf32>
    %cst_20 = arith.constant dense<0.000000e+00> : vector<32xf32>
    %20 = vector.multi_reduction <add>, %19, %cst_20 [0] : vector<8x32xf32> to vector<32xf32>
    %21 = vector.shape_cast %20 : vector<32xf32> to vector<1x32xf32>
    %cst_21 = arith.constant 8.000000e+00 : f32
    %22 = vector.broadcast %cst_21 : f32 to vector<1x32xf32>
    %23 = arith.divf %21, %22 : vector<1x32xf32>
    %24 = vector.broadcast %14 : vector<1x32xf32> to vector<8x32xf32>
    %25 = arith.subf %10, %24 : vector<8x32xf32>
    %cst_22 = arith.constant 9.99999974E-6 : f32
    %26 = vector.broadcast %cst_22 : f32 to vector<1x32xf32>
    %27 = arith.addf %23, %26 : vector<1x32xf32>
    %28 = math.rsqrt %27 : vector<1x32xf32>
    %29 = vector.broadcast %28 : vector<1x32xf32> to vector<8x32xf32>
    %30 = arith.mulf %25, %29 : vector<8x32xf32>
    %31 = vector.broadcast %3 : vector<1x32xf32> to vector<8x32xf32>
    %32 = arith.mulf %30, %31 : vector<8x32xf32>
    %33 = vector.broadcast %4 : vector<1x32xf32> to vector<8x32xf32>
    %34 = arith.addf %32, %33 : vector<8x32xf32>
    %cst_23 = arith.constant 0.000000e+00 : f32
    %35 = vector.broadcast %cst_23 : f32 to vector<8x32xf32>
    %36 = arith.maximumf %34, %35 : vector<8x32xf32>
    %cst_24 = arith.constant dense<0.000000e+00> : vector<8x32xf32>
    %37 = tpu.matmul %36, %5, %cst_24 {dimension_numbers = #tpu.dot_dimension_numbers<[1], [0], [0], [1], [0, 0, 1, 1], [], []>} : vector<8x32xf32>, vector<32x32xf32>, vector<8x32xf32> -> vector<8x32xf32>
    %cst_25 = arith.constant dense<0.000000e+00> : vector<32xf32>
    %38 = vector.multi_reduction <add>, %37, %cst_25 [0] : vector<8x32xf32> to vector<32xf32>
    %39 = vector.shape_cast %38 : vector<32xf32> to vector<1x32xf32>
    %cst_26 = arith.constant 8.000000e+00 : f32
    %40 = vector.broadcast %cst_26 : f32 to vector<1x32xf32>
    %41 = arith.divf %39, %40 : vector<1x32xf32>
    %42 = vector.broadcast %41 : vector<1x32xf32> to vector<8x32xf32>
    %43 = arith.subf %37, %42 : vector<8x32xf32>
    %44 = vector.broadcast %41 : vector<1x32xf32> to vector<8x32xf32>
    %45 = arith.subf %37, %44 : vector<8x32xf32>
    %46 = arith.mulf %43, %45 : vector<8x32xf32>
    %cst_27 = arith.constant dense<0.000000e+00> : vector<32xf32>
    %47 = vector.multi_reduction <add>, %46, %cst_27 [0] : vector<8x32xf32> to vector<32xf32>
    %48 = vector.shape_cast %47 : vector<32xf32> to vector<1x32xf32>
    %cst_28 = arith.constant 8.000000e+00 : f32
    %49 = vector.broadcast %cst_28 : f32 to vector<1x32xf32>
    %50 = arith.divf %48, %49 : vector<1x32xf32>
    %51 = vector.broadcast %41 : vector<1x32xf32> to vector<8x32xf32>
    %52 = arith.subf %37, %51 : vector<8x32xf32>
    %cst_29 = arith.constant 9.99999974E-6 : f32
    %53 = vector.broadcast %cst_29 : f32 to vector<1x32xf32>
    %54 = arith.addf %50, %53 : vector<1x32xf32>
    %55 = math.rsqrt %54 : vector<1x32xf32>
    %56 = vector.broadcast %55 : vector<1x32xf32> to vector<8x32xf32>
    %57 = arith.mulf %52, %56 : vector<8x32xf32>
    %58 = vector.broadcast %6 : vector<1x32xf32> to vector<8x32xf32>
    %59 = arith.mulf %57, %58 : vector<8x32xf32>
    %60 = vector.broadcast %7 : vector<1x32xf32> to vector<8x32xf32>
    %61 = arith.addf %59, %60 : vector<8x32xf32>
    %cst_30 = arith.constant 0.000000e+00 : f32
    %62 = vector.broadcast %cst_30 : f32 to vector<8x32xf32>
    %63 = arith.maximumf %61, %62 : vector<8x32xf32>
    %cst_31 = arith.constant dense<0.000000e+00> : vector<8x128xf32>
    %64 = tpu.matmul %63, %8, %cst_31 {dimension_numbers = #tpu.dot_dimension_numbers<[1], [0], [0], [1], [0, 0, 1, 1], [], []>} : vector<8x32xf32>, vector<32x128xf32>, vector<8x128xf32> -> vector<8x128xf32>
    %65 = vector.broadcast %9 : vector<1x128xf32> to vector<8x128xf32>
    %66 = arith.addf %64, %65 : vector<8x128xf32>
    %cst_32 = arith.constant dense<0.000000e+00> : vector<128xf32>
    %67 = vector.multi_reduction <add>, %66, %cst_32 [0] : vector<8x128xf32> to vector<128xf32>
    %68 = vector.shape_cast %67 : vector<128xf32> to vector<1x128xf32>
    %cst_33 = arith.constant 8.000000e+00 : f32
    %69 = vector.broadcast %cst_33 : f32 to vector<1x128xf32>
    %70 = arith.divf %68, %69 : vector<1x128xf32>
    %c0_34 = arith.constant 0 : index
    %c0_35 = arith.constant 0 : index
    %c0_36 = arith.constant 0 : index
    %71 = vector.load %arg14[%c0_34, %c0_35, %c0_36] : memref<1x1x128xf32, #tpu.memory_space<vmem>>, vector<1x1x128xf32>
    %72 = vector.shape_cast %71 : vector<1x1x128xf32> to vector<1x128xf32>
    %73 = vector.shape_cast %70 : vector<1x128xf32> to vector<1x1x128xf32>
    tpu.vector_store %arg14[%c0_34, %c0_35, %c0_36], %73 {strides = array<i32>} : memref<1x1x128xf32, #tpu.memory_space<vmem>>, vector<1x1x128xf32>,
    %c0_37 = arith.constant 0 : index
    %c0_38 = arith.constant 0 : index
    %74 = vector.load %arg10[%c0_37, %c0_38] : memref<1x128xf32, #tpu.memory_space<vmem>>, vector<1x128xf32>
    %75 = arith.mulf %70, %74 : vector<1x128xf32>
    %cst_39 = arith.constant dense<0.000000e+00> : vector<1xf32>
    %76 = vector.multi_reduction <add>, %75, %cst_39 [1] : vector<1x128xf32> to vector<1xf32>
    %77 = vector.shape_cast %76 : vector<1xf32> to vector<1x1xf32>
    %c0_40 = arith.constant 0 : index
    %c0_41 = arith.constant 0 : index
    %78 = vector.load %arg11[%c0_40, %c0_41] : memref<1x16xf32, #tpu.memory_space<vmem>>, vector<1x16xf32>
    %79 = vector.broadcast %78 : vector<1x16xf32> to vector<8x16xf32>
    %80 = arith.mulf %1, %79 : vector<8x16xf32>
    %cst_42 = arith.constant dense<0.000000e+00> : vector<8xf32>
    %81 = vector.multi_reduction <add>, %80, %cst_42 [1] : vector<8x16xf32> to vector<8xf32>
    %82 = vector.shape_cast %81 : vector<8xf32> to vector<8x1xf32>
    %83 = vector.broadcast %77 : vector<1x1xf32> to vector<8x1xf32>
    %84 = arith.addf %82, %83 : vector<8x1xf32>
    %c0_43 = arith.constant 0 : index
    %c0_44 = arith.constant 0 : index
    %85 = vector.load %arg12[%c0_43, %c0_44] : memref<1x1xf32, #tpu.memory_space<vmem>>, vector<1x1xf32>
    %86 = vector.broadcast %85 : vector<1x1xf32> to vector<8x1xf32>
    %87 = arith.addf %84, %86 : vector<8x1xf32>
    %88 = vector.shape_cast %87 : vector<8x1xf32> to vector<8x1xf32>
    %89 = vector.broadcast %88 : vector<8x1xf32> to vector<8x128xf32>
    %c0_45 = arith.constant 0 : index
    %c0_46 = arith.constant 0 : index
    %c0_47 = arith.constant 0 : index
    %90 = vector.load %arg13[%c0_45, %c0_46, %c0_47] : memref<1x8x128xf32, #tpu.memory_space<vmem>>, vector<1x8x128xf32>
    %91 = vector.shape_cast %90 : vector<1x8x128xf32> to vector<8x128xf32>
    %92 = vector.shape_cast %89 : vector<8x128xf32> to vector<1x8x128xf32>
    tpu.vector_store %arg13[%c0_45, %c0_46, %c0_47], %92 {strides = array<i32>} : memref<1x8x128xf32, #tpu.memory_space<vmem>>, vector<1x8x128xf32>,
    return
  }
  func.func @transform_0(%arg0: i32) -> (i32, i32, i32) {
    %c0_i32 = arith.constant 0 : i32
    %c0_i32_0 = arith.constant 0 : i32
    %c0_i32_1 = arith.constant 0 : i32
    return %arg0, %c0_i32, %c0_i32_0 : i32, i32, i32
  }
  func.func @transform_1(%arg0: i32) -> (i32, i32) {
    %c0_i32 = arith.constant 0 : i32
    %c0_i32_0 = arith.constant 0 : i32
    %c0_i32_1 = arith.constant 0 : i32
    return %c0_i32, %c0_i32_0 : i32, i32
  }
  func.func @transform_2(%arg0: i32) -> (i32, i32) {
    %c0_i32 = arith.constant 0 : i32
    %c0_i32_0 = arith.constant 0 : i32
    %c0_i32_1 = arith.constant 0 : i32
    return %c0_i32, %c0_i32_0 : i32, i32
  }
  func.func @transform_3(%arg0: i32) -> (i32, i32) {
    %c0_i32 = arith.constant 0 : i32
    %c0_i32_0 = arith.constant 0 : i32
    %c0_i32_1 = arith.constant 0 : i32
    return %c0_i32, %c0_i32_0 : i32, i32
  }
  func.func @transform_4(%arg0: i32) -> (i32, i32) {
    %c0_i32 = arith.constant 0 : i32
    %c0_i32_0 = arith.constant 0 : i32
    %c0_i32_1 = arith.constant 0 : i32
    return %c0_i32, %c0_i32_0 : i32, i32
  }
  func.func @transform_5(%arg0: i32) -> (i32, i32) {
    %c0_i32 = arith.constant 0 : i32
    %c0_i32_0 = arith.constant 0 : i32
    %c0_i32_1 = arith.constant 0 : i32
    return %c0_i32, %c0_i32_0 : i32, i32
  }
  func.func @transform_6(%arg0: i32) -> (i32, i32) {
    %c0_i32 = arith.constant 0 : i32
    %c0_i32_0 = arith.constant 0 : i32
    %c0_i32_1 = arith.constant 0 : i32
    return %c0_i32, %c0_i32_0 : i32, i32
  }
  func.func @transform_7(%arg0: i32) -> (i32, i32) {
    %c0_i32 = arith.constant 0 : i32
    %c0_i32_0 = arith.constant 0 : i32
    %c0_i32_1 = arith.constant 0 : i32
    return %c0_i32, %c0_i32_0 : i32, i32
  }
  func.func @transform_8(%arg0: i32) -> (i32, i32) {
    %c0_i32 = arith.constant 0 : i32
    %c0_i32_0 = arith.constant 0 : i32
    %c0_i32_1 = arith.constant 0 : i32
    return %c0_i32, %c0_i32_0 : i32, i32
  }
  func.func @transform_9(%arg0: i32) -> (i32, i32) {
    %c0_i32 = arith.constant 0 : i32
    %c0_i32_0 = arith.constant 0 : i32
    %c0_i32_1 = arith.constant 0 : i32
    return %c0_i32, %c0_i32_0 : i32, i32
  }
  func.func @transform_10(%arg0: i32) -> (i32, i32) {
    %c0_i32 = arith.constant 0 : i32
    %c0_i32_0 = arith.constant 0 : i32
    %c0_i32_1 = arith.constant 0 : i32
    return %c0_i32, %c0_i32_0 : i32, i32
  }
  func.func @transform_11(%arg0: i32) -> (i32, i32) {
    %c0_i32 = arith.constant 0 : i32
    %c0_i32_0 = arith.constant 0 : i32
    %c0_i32_1 = arith.constant 0 : i32
    return %c0_i32, %c0_i32_0 : i32, i32
  }
  func.func @transform_12(%arg0: i32) -> (i32, i32, i32) {
    %c0_i32 = arith.constant 0 : i32
    %c0_i32_0 = arith.constant 0 : i32
    %c0_i32_1 = arith.constant 0 : i32
    return %arg0, %c0_i32, %c0_i32_0 : i32, i32, i32
  }
  func.func @transform_13(%arg0: i32) -> (i32, i32, i32) {
    %c0_i32 = arith.constant 0 : i32
    %c0_i32_0 = arith.constant 0 : i32
    %c0_i32_1 = arith.constant 0 : i32
    return %arg0, %c0_i32, %c0_i32_0 : i32, i32, i32
  }
}

</mosaic_0001>

<llo_original>
// kernel: lr_context_forward.1
$region0: #{lr_context_forward.1}
  #allocation0 [shape = 'u32[]', space=smem, size = 0x4, offset = 0x4, fixed_abs, tag = 'smem constant byte address 0x4 - core index']
  #allocation1 [shape = 'u32[144,128]{1,0:T(1,128)}', space=vmem, size = 0x12000, scoped, tag = 'internal scratch']
  #allocation2 [shape = 'f32[1,1]{1,0:T(1,128)S(1)}', space=vmem, size = 0x200, scoped, tag = 'scoped memory for lr_context_forward.1']
  %s0 = inlined_call_operand.vmem [shape: f32[1,8,16], index: 0, kind: input, shape index: {}]
  %s1 = inlined_call_operand.vmem [shape: f32[16,32], index: 1, kind: input, shape index: {}]
  %s2 = inlined_call_operand.vmem [shape: f32[1,32], index: 2, kind: input, shape index: {}]
  %s3 = inlined_call_operand.vmem [shape: f32[1,32], index: 3, kind: input, shape index: {}]
  %s4 = inlined_call_operand.vmem [shape: f32[32,32], index: 4, kind: input, shape index: {}]
  %s5 = inlined_call_operand.vmem [shape: f32[1,32], index: 5, kind: input, shape index: {}]
  %s6 = inlined_call_operand.vmem [shape: f32[1,32], index: 6, kind: input, shape index: {}]
  %s7 = inlined_call_operand.vmem [shape: f32[32,128], index: 7, kind: input, shape index: {}]
  %s8 = inlined_call_operand.vmem [shape: f32[1,128], index: 8, kind: input, shape index: {}]
  %s9 = inlined_call_operand.vmem [shape: f32[1,128], index: 9, kind: input, shape index: {}]
  %s10 = inlined_call_operand.vmem [shape: f32[1,16], index: 10, kind: input, shape index: {}]
  %s11 = inlined_call_operand.<no memory space> [shape: f32[1,1], index: 11, kind: input, shape index: {}]
  %s12 = inlined_call_operand.vmem [shape: f32[1,8,128], index: 12, kind: output, shape index: {0}]
  %s13 = inlined_call_operand.vmem [shape: f32[1,1,128], index: 13, kind: output, shape index: {1}]
  %14 = xla_tuple %s12, %s13
  %s15 = sld [smem:[#allocation0]]
  $region66: #{lr_context_forward.1} parent=0
    _
  %s17 = ssub.s32 1, %s15
  %s18 = scalar_select 0, %s17, %s15
  %v19 = vstv %s11
  %20 = vst [vmem:[#allocation2] sm:$0x1] %v19
  // Predicated region
  $region2: #{lr_context_forward.1} parent=0 // pred_check
    _
  $region3: #{lr_context_forward.1} parent=0 // pred_check_branch
    %22 = sbr.rel (0) target = $region5
  $region4: #{lr_context_forward.1} parent=0 // pred_region
    _
  $region5: #{lr_context_forward.1} parent=0 // pred_fallthru
    _
  // Predicated region
  $region6: #{lr_context_forward.1} parent=0 // pred_check
    _
  $region7: #{lr_context_forward.1} parent=0 // pred_check_branch
    %24 = sbr.rel (0) target = $region9
  $region8: #{lr_context_forward.1} parent=0 // pred_region
    _
  $region9: #{lr_context_forward.1} parent=0 // pred_fallthru
    _
  // Predicated region
  $region10: #{lr_context_forward.1} parent=0 // pred_check
    _
  $region11: #{lr_context_forward.1} parent=0 // pred_check_branch
    %26 = sbr.rel (0) target = $region13
  $region12: #{lr_context_forward.1} parent=0 // pred_region
    _
  $region13: #{lr_context_forward.1} parent=0 // pred_fallthru
    _
  // Predicated region
  $region14: #{lr_context_forward.1} parent=0 // pred_check
    _
  $region15: #{lr_context_forward.1} parent=0 // pred_check_branch
    %28 = sbr.rel (0) target = $region17
  $region16: #{lr_context_forward.1} parent=0 // pred_region
    _
  $region17: #{lr_context_forward.1} parent=0 // pred_fallthru
    _
  // Predicated region
  $region18: #{lr_context_forward.1} parent=0 // pred_check
    _
  $region19: #{lr_context_forward.1} parent=0 // pred_check_branch
    %30 = sbr.rel (0) target = $region21
  $region20: #{lr_context_forward.1} parent=0 // pred_region
    _
  $region21: #{lr_context_forward.1} parent=0 // pred_fallthru
    _
  // Predicated region
  $region22: #{lr_context_forward.1} parent=0 // pred_check
    _
  $region23: #{lr_context_forward.1} parent=0 // pred_check_branch
    %32 = sbr.rel (0) target = $region25
  $region24: #{lr_context_forward.1} parent=0 // pred_region
    _
  $region25: #{lr_context_forward.1} parent=0 // pred_fallthru
    _
  // Predicated region
  $region26: #{lr_context_forward.1} parent=0 // pred_check
    _
  $region27: #{lr_context_forward.1} parent=0 // pred_check_branch
    %34 = sbr.rel (0) target = $region29
  $region28: #{lr_context_forward.1} parent=0 // pred_region
    _
  $region29: #{lr_context_forward.1} parent=0 // pred_fallthru
    _
  // Predicated region
  $region30: #{lr_context_forward.1} parent=0 // pred_check
    _
  $region31: #{lr_context_forward.1} parent=0 // pred_check_branch
    %36 = sbr.rel (0) target = $region33
  $region32: #{lr_context_forward.1} parent=0 // pred_region
    _
  $region33: #{lr_context_forward.1} parent=0 // pred_fallthru
    _
  // Predicated region
  $region34: #{lr_context_forward.1} parent=0 // pred_check
    _
  $region35: #{lr_context_forward.1} parent=0 // pred_check_branch
    %38 = sbr.rel (0) target = $region37
  $region36: #{lr_context_forward.1} parent=0 // pred_region
    _
  $region37: #{lr_context_forward.1} parent=0 // pred_fallthru
    _
  // Predicated region
  $region38: #{lr_context_forward.1} parent=0 // pred_check
    _
  $region39: #{lr_context_forward.1} parent=0 // pred_check_branch
    %40 = sbr.rel (0) target = $region41
  $region40: #{lr_context_forward.1} parent=0 // pred_region
    _
  $region41: #{lr_context_forward.1} parent=0 // pred_fallthru
    _
  // Predicated region
  $region42: #{lr_context_forward.1} parent=0 // pred_check
    _
  $region43: #{lr_context_forward.1} parent=0 // pred_check_branch
    %42 = sbr.rel (0) target = $region45
  $region44: #{lr_context_forward.1} parent=0 // pred_region
    _
  $region45: #{lr_context_forward.1} parent=0 // pred_fallthru
    _
  // Predicated region
  $region46: #{lr_context_forward.1} parent=0 // pred_check
    _
  $region47: #{lr_context_forward.1} parent=0 // pred_check_branch
    %44 = sbr.rel (0) target = $region49
  $region48: #{lr_context_forward.1} parent=0 // pred_region
    _
  $region49: #{lr_context_forward.1} parent=0 // pred_fallthru
    _
  %v45 = vld [vmem:[%s0] sm:$0xff]
  %v46 = vld [vmem:[%s1] sm:$0xff]
  %v47 = vld [vmem:[%s1 + $0x8] sm:$0xff]
  %v48 = vld [vmem:[%s2] sm:$0x1]
  %v49 = vld [vmem:[%s3] sm:$0x1]
  %v50 = vld [vmem:[%s4] sm:$0xff]
  %v51 = vld [vmem:[%s4 + $0x8] sm:$0xff]
  %v52 = vld [vmem:[%s4 + $0x10] sm:$0xff]
  %v53 = vld [vmem:[%s4 + $0x18] sm:$0xff]
  %v54 = vld [vmem:[%s5] sm:$0x1]
  %v55 = vld [vmem:[%s6] sm:$0x1]
  %v56 = vld [vmem:[%s7] sm:$0xff]
  %v57 = vld [vmem:[%s7 + $0x8] sm:$0xff]
  %v58 = vld [vmem:[%s7 + $0x10] sm:$0xff]
  %v59 = vld [vmem:[%s7 + $0x18] sm:$0xff]
  %v60 = vld [vmem:[%s8] sm:$0x1]
  %vm61 = vcmask 130048
  %v63 = vsel %vm61, %v45, 0
  %65 = vmatprep.subr.mxu0 0.0
  %66 = vmatpush1.msra.mxu0 %v46
  %67 = vmatprep.subr.mxu0 0.0
  %68 = vmatpush1.msra.mxu0 %v47
  %69 = vmatprep.subr.mxu0 0.0
  %70 = vmatpush1.msra.mxu0 0.0
  %71 = vmatprep.subr.mxu0 0.0
  %72 = vmatpush1.msra.mxu0 0.0
  %73 = vmatprep.subr.mxu0 0.0
  %74 = vmatpush1.msra.mxu0 0.0
  %75 = vmatprep.subr.mxu0 0.0
  %76 = vmatpush1.msra.mxu0 0.0
  %77 = vmatprep.subr.mxu0 0.0
  %78 = vmatpush1.msra.mxu0 0.0
  %79 = vmatprep.subr.mxu0 0.0
  %80 = vmatpush1.msra.mxu0 0.0
  %81 = vmatprep.subr.mxu0 0.0
  %82 = vmatpush1.msra.mxu0 0.0
  %83 = vmatprep.subr.mxu0 0.0
  %84 = vmatpush1.msra.mxu0 0.0
  %85 = vmatprep.subr.mxu0 0.0
  %86 = vmatpush1.msra.mxu0 0.0
  %87 = vmatprep.subr.mxu0 0.0
  %88 = vmatpush1.msra.mxu0 0.0
  %89 = vmatprep.subr.mxu0 0.0
  %90 = vmatpush1.msra.mxu0 0.0
  %91 = vmatprep.subr.mxu0 0.0
  %92 = vmatpush1.msra.mxu0 0.0
  %93 = vmatprep.subr.mxu0 0.0
  %94 = vmatpush1.msra.mxu0 0.0
  %95 = vmatprep.subr.mxu0 0.0
  %96 = vmatpush1.msra.mxu0 0.0
  %97 = vmatprep.subr.mxu0 0.0
  %98 = vmatpush1.msra.mxu0 0.0
  %99 = vmatprep.subr.mxu0 0.0
  %100 = vmatpush1.msra.mxu0 0.0
  %101 = vmatprep.subr.mxu0 0.0
  %102 = vmatpush1.msra.mxu0 0.0
  %103 = vmatprep.subr.mxu0 0.0
  %104 = vmatpush1.msra.mxu0 0.0
  %105 = vmatprep.subr.mxu0 0.0
  %106 = vmatpush1.msra.mxu0 0.0
  %107 = vmatprep.subr.mxu0 0.0
  %108 = vmatpush1.msra.mxu0 0.0
  %109 = vmatprep.subr.mxu0 0.0
  %110 = vmatpush1.msra.mxu0 0.0
  %111 = vmatprep.subr.mxu0 0.0
  %112 = vmatpush1.msra.mxu0 0.0
  %113 = vmatprep.subr.mxu0 0.0
  %114 = vmatpush1.msra.mxu0 0.0
  %115 = vmatprep.subr.mxu0 0.0
  %116 = vmatpush1.msra.mxu0 0.0
  %117 = vmatprep.subr.mxu0 0.0
  %118 = vmatpush1.msra.mxu0 0.0
  %119 = vmatprep.subr.mxu0 0.0
  %120 = vmatpush1.msra.mxu0 0.0
  %121 = vmatprep.subr.mxu0 0.0
  %122 = vmatpush1.msra.mxu0 0.0
  %123 = vmatprep.subr.mxu0 0.0
  %124 = vmatpush1.msra.mxu0 0.0
  %125 = vmatprep.subr.mxu0 0.0
  %126 = vmatpush1.msra.mxu0 0.0
  %127 = vmatprep.subr.mxu0 0.0
  %128 = vmatpush1.msra.mxu0 0.0
  %129 = vmatprep.mubr.f32.mxu0 0.0
  %130 = vmatmul.mubr.f32.gmra.mrb[0].mxu0 %v63
  %v131 = vpop.f32.mrb[0].mxu0
  %v132 = vadd.f32 0.0, %v131
  %v133 = vpop.f32.mrb[0].mxu0
  %134 = vdwg.mxu0
  %vm135 = vcmask 261120
  %v136 = vsel %vm135, %v132, 0.0
  %v137 = vrot.slane %v136, 4
  %v138 = vadd.f32 %v136, %v137
  %v139 = vrot.slane %v138, 2
  %v140 = vadd.f32 %v138, %v139
  %v141 = vrot.slane %v140, 1
  %v142 = vadd.f32 %v140, %v141
  %v143 = vrcp.pop 8.0
  %v144 = vmul.f32 %v142, %v143
  %v145 = vsub.f32 %v132, %v144
  %v146 = vmul.f32 %v145, %v145
  %v147 = vsel %vm135, %v146, 0.0
  %v148 = vrot.slane %v147, 4
  %v149 = vadd.f32 %v147, %v148
  %v150 = vrot.slane %v149, 2
  %v151 = vadd.f32 %v149, %v150
  %v152 = vrot.slane %v151, 1
  %v153 = vadd.f32 %v151, %v152
  %v154 = vmul.f32 %v153, %v143
  %v155 = vadd.f32 %v154, 1e-05
  %v156 = vrsqrt.pop %v155
  %v157 = vmul.f32 %v145, %v156
  %v159 = vlaneseq
  %v160 = vshrl.u32 %v159, 7
  %v161 = vsub.s32 0, %v160
  %v162 = vrot.slane %v48, %v161
  %v164 = vmul.f32 %v157, %v162
  %v166 = vlaneseq
  %v167 = vshrl.u32 %v166, 7
  %v168 = vsub.s32 0, %v167
  %v169 = vrot.slane %v49, %v168
  %v171 = vadd.f32 %v164, %v169
  %v172 = vmax.f32 %v171, 0.0
  %v174 = vsel %vm135, %v172, 0
  %176 = vmatprep.subr.mxu0 0.0
  %177 = vmatpush1.msra.mxu0 %v50
  %178 = vmatprep.subr.mxu0 0.0
  %179 = vmatpush1.msra.mxu0 %v51
  %180 = vmatprep.subr.mxu0 0.0
  %181 = vmatpush1.msra.mxu0 %v52
  %182 = vmatprep.subr.mxu0 0.0
  %183 = vmatpush1.msra.mxu0 %v53
  %184 = vmatprep.subr.mxu0 0.0
  %185 = vmatpush1.msra.mxu0 0.0
  %186 = vmatprep.subr.mxu0 0.0
  %187 = vmatpush1.msra.mxu0 0.0
  %188 = vmatprep.subr.mxu0 0.0
  %189 = vmatpush1.msra.mxu0 0.0
  %190 = vmatprep.subr.mxu0 0.0
  %191 = vmatpush1.msra.mxu0 0.0
  %192 = vmatprep.subr.mxu0 0.0
  %193 = vmatpush1.msra.mxu0 0.0
  %194 = vmatprep.subr.mxu0 0.0
  %195 = vmatpush1.msra.mxu0 0.0
  %196 = vmatprep.subr.mxu0 0.0
  %197 = vmatpush1.msra.mxu0 0.0
  %198 = vmatprep.subr.mxu0 0.0
  %199 = vmatpush1.msra.mxu0 0.0
  %200 = vmatprep.subr.mxu0 0.0
  %201 = vmatpush1.msra.mxu0 0.0
  %202 = vmatprep.subr.mxu0 0.0
  %203 = vmatpush1.msra.mxu0 0.0
  %204 = vmatprep.subr.mxu0 0.0
  %205 = vmatpush1.msra.mxu0 0.0
  %206 = vmatprep.subr.mxu0 0.0
  %207 = vmatpush1.msra.mxu0 0.0
  %208 = vmatprep.subr.mxu0 0.0
  %209 = vmatpush1.msra.mxu0 0.0
  %210 = vmatprep.subr.mxu0 0.0
  %211 = vmatpush1.msra.mxu0 0.0
  %212 = vmatprep.subr.mxu0 0.0
  %213 = vmatpush1.msra.mxu0 0.0
  %214 = vmatprep.subr.mxu0 0.0
  %215 = vmatpush1.msra.mxu0 0.0
  %216 = vmatprep.subr.mxu0 0.0
  %217 = vmatpush1.msra.mxu0 0.0
  %218 = vmatprep.subr.mxu0 0.0
  %219 = vmatpush1.msra.mxu0 0.0
  %220 = vmatprep.subr.mxu0 0.0
  %221 = vmatpush1.msra.mxu0 0.0
  %222 = vmatprep.subr.mxu0 0.0
  %223 = vmatpush1.msra.mxu0 0.0
  %224 = vmatprep.subr.mxu0 0.0
  %225 = vmatpush1.msra.mxu0 0.0
  %226 = vmatprep.subr.mxu0 0.0
  %227 = vmatpush1.msra.mxu0 0.0
  %228 = vmatprep.subr.mxu0 0.0
  %229 = vmatpush1.msra.mxu0 0.0
  %230 = vmatprep.subr.mxu0 0.0
  %231 = vmatpush1.msra.mxu0 0.0
  %232 = vmatprep.subr.mxu0 0.0
  %233 = vmatpush1.msra.mxu0 0.0
  %234 = vmatprep.subr.mxu0 0.0
  %235 = vmatpush1.msra.mxu0 0.0
  %236 = vmatprep.subr.mxu0 0.0
  %237 = vmatpush1.msra.mxu0 0.0
  %238 = vmatprep.subr.mxu0 0.0
  %239 = vmatpush1.msra.mxu0 0.0
  %240 = vmatprep.mubr.f32.mxu0 0.0
  %241 = vmatmul.mubr.f32.gmra.mrb[0].mxu0 %v174
  %v242 = vpop.f32.mrb[0].mxu0
  %v243 = vadd.f32 0.0, %v242
  %v244 = vpop.f32.mrb[0].mxu0
  %245 = vdwg.mxu0
  %v246 = vsel %vm135, %v243, 0.0
  %v247 = vrot.slane %v246, 4
  %v248 = vadd.f32 %v246, %v247
  %v249 = vrot.slane %v248, 2
  %v250 = vadd.f32 %v248, %v249
  %v251 = vrot.slane %v250, 1
  %v252 = vadd.f32 %v250, %v251
  %v253 = vmul.f32 %v252, %v143
  %v254 = vsub.f32 %v243, %v253
  %v255 = vmul.f32 %v254, %v254
  %v256 = vsel %vm135, %v255, 0.0
  %v257 = vrot.slane %v256, 4
  %v258 = vadd.f32 %v256, %v257
  %v259 = vrot.slane %v258, 2
  %v260 = vadd.f32 %v258, %v259
  %v261 = vrot.slane %v260, 1
  %v262 = vadd.f32 %v260, %v261
  %v263 = vmul.f32 %v262, %v143
  %v264 = vadd.f32 %v263, 1e-05
  %v265 = vrsqrt.pop %v264
  %v266 = vmul.f32 %v254, %v265
  %v268 = vlaneseq
  %v269 = vshrl.u32 %v268, 7
  %v270 = vsub.s32 0, %v269
  %v271 = vrot.slane %v54, %v270
  %v273 = vmul.f32 %v266, %v271
  %v275 = vlaneseq
  %v276 = vshrl.u32 %v275, 7
  %v277 = vsub.s32 0, %v276
  %v278 = vrot.slane %v55, %v277
  %v280 = vadd.f32 %v273, %v278
  %v281 = vmax.f32 %v280, 0.0
  %v283 = vlaneseq
  %v284 = vshrl.u32 %v283, 7
  %v285 = vsub.s32 0, %v284
  %v286 = vrot.slane %v60, %v285
  %v289 = vsel %vm135, %v281, 0
  %291 = vmatprep.subr.mxu0 0.0
  %292 = vmatpush1.msra.mxu0 %v56
  %293 = vmatprep.subr.mxu0 0.0
  %294 = vmatpush1.msra.mxu0 %v57
  %295 = vmatprep.subr.mxu0 0.0
  %296 = vmatpush1.msra.mxu0 %v58
  %297 = vmatprep.subr.mxu0 0.0
  %298 = vmatpush1.msra.mxu0 %v59
  %299 = vmatprep.subr.mxu0 0.0
  %300 = vmatpush1.msra.mxu0 0.0
  %301 = vmatprep.subr.mxu0 0.0
  %302 = vmatpush1.msra.mxu0 0.0
  %303 = vmatprep.subr.mxu0 0.0
  %304 = vmatpush1.msra.mxu0 0.0
  %305 = vmatprep.subr.mxu0 0.0
  %306 = vmatpush1.msra.mxu0 0.0
  %307 = vmatprep.subr.mxu0 0.0
  %308 = vmatpush1.msra.mxu0 0.0
  %309 = vmatprep.subr.mxu0 0.0
  %310 = vmatpush1.msra.mxu0 0.0
  %311 = vmatprep.subr.mxu0 0.0
  %312 = vmatpush1.msra.mxu0 0.0
  %313 = vmatprep.subr.mxu0 0.0
  %314 = vmatpush1.msra.mxu0 0.0
  %315 = vmatprep.subr.mxu0 0.0
  %316 = vmatpush1.msra.mxu0 0.0
  %317 = vmatprep.subr.mxu0 0.0
  %318 = vmatpush1.msra.mxu0 0.0
  %319 = vmatprep.subr.mxu0 0.0
  %320 = vmatpush1.msra.mxu0 0.0
  %321 = vmatprep.subr.mxu0 0.0
  %322 = vmatpush1.msra.mxu0 0.0
  %323 = vmatprep.subr.mxu0 0.0
  %324 = vmatpush1.msra.mxu0 0.0
  %325 = vmatprep.subr.mxu0 0.0
  %326 = vmatpush1.msra.mxu0 0.0
  %327 = vmatprep.subr.mxu0 0.0
  %328 = vmatpush1.msra.mxu0 0.0
  %329 = vmatprep.subr.mxu0 0.0
  %330 = vmatpush1.msra.mxu0 0.0
  %331 = vmatprep.subr.mxu0 0.0
  %332 = vmatpush1.msra.mxu0 0.0
  %333 = vmatprep.subr.mxu0 0.0
  %334 = vmatpush1.msra.mxu0 0.0
  %335 = vmatprep.subr.mxu0 0.0
  %336 = vmatpush1.msra.mxu0 0.0
  %337 = vmatprep.subr.mxu0 0.0
  %338 = vmatpush1.msra.mxu0 0.0
  %339 = vmatprep.subr.mxu0 0.0
  %340 = vmatpush1.msra.mxu0 0.0
  %341 = vmatprep.subr.mxu0 0.0
  %342 = vmatpush1.msra.mxu0 0.0
  %343 = vmatprep.subr.mxu0 0.0
  %344 = vmatpush1.msra.mxu0 0.0
  %345 = vmatprep.subr.mxu0 0.0
  %346 = vmatpush1.msra.mxu0 0.0
  %347 = vmatprep.subr.mxu0 0.0
  %348 = vmatpush1.msra.mxu0 0.0
  %349 = vmatprep.subr.mxu0 0.0
  %350 = vmatpush1.msra.mxu0 0.0
  %351 = vmatprep.subr.mxu0 0.0
  %352 = vmatpush1.msra.mxu0 0.0
  %353 = vmatprep.subr.mxu0 0.0
  %354 = vmatpush1.msra.mxu0 0.0
  %355 = vmatprep.mubr.f32.mxu0 0.0
  %356 = vmatmul.mubr.f32.gmra.mrb[0].mxu0 %v289
  %v357 = vpop.f32.mrb[0].mxu0
  %v358 = vadd.f32 %v286, %v357
  %v359 = vpop.f32.mrb[0].mxu0
  %360 = vdwg.mxu0
  %v361 = vrot.slane %v358, 4
  %v362 = vadd.f32 %v358, %v361
  %v363 = vrot.slane %v362, 2
  %v364 = vadd.f32 %v362, %v363
  %v365 = vrot.slane %v364, 1
  %v366 = vadd.f32 %v364, %v365
  %v367 = vmul.f32 %v366, %v143
  %368 = vst [vmem:[%s13] sm:$0x1] %v367
  %v369 = vld [vmem:[%s9] sm:$0x1]
  %v370 = vmul.f32 %v367, %v369
  %vm371 = vcmask 1040384
  %v372 = vsel %vm371, %v370, 0.0
  %373 = vadd.xlane.f32.xlu0 %v372
  %v374 = vpop.xlane.xlu0 %373
  %v375 = vld [vmem:[%s10] sm:$0x1]
  %v377 = vlaneseq
  %v378 = vshrl.u32 %v377, 7
  %v379 = vsub.s32 0, %v378
  %v380 = vrot.slane %v375, %v379
  %v382 = vmul.f32 %v45, %v380
  %v383 = vsel %vm61, %v382, 0.0
  %384 = vadd.xlane.f32.xlu0 %v383
  %v385 = vpop.xlane.xlu0 %384
  %v386 = vlaneseq
  %v387 = vshrl.u32 %v386, 7
  %v388 = vsub.s32 0, %v387
  %v389 = vrot.slane %v374, %v388
  %v390 = vadd.f32 %v385, %v389
  %v391 = vld [vmem:[#allocation2] sm:$0x1]
  %v393 = vlaneseq
  %v394 = vshrl.u32 %v393, 7
  %v395 = vsub.s32 0, %v394
  %v396 = vrot.slane %v391, %v395
  %v398 = vadd.f32 %v390, %v396
  %400 = vset.pattern.permute.xlu0 0
  %401 = vperm.xlu0 %400, %v398
  %v402 = vpop.permute.xlu0 %401
  %404 = vst [vmem:[%s12] sm:$0xff] %v402
  // Predicated region
  $region50: #{lr_context_forward.1} parent=0 // pred_check
    _
  $region51: #{lr_context_forward.1} parent=0 // pred_check_branch
    %406 = sbr.rel (0) target = $region53
  $region52: #{lr_context_forward.1} parent=0 // pred_region
    _
  $region53: #{lr_context_forward.1} parent=0 // pred_fallthru
    _
  // Predicated region
  $region54: #{lr_context_forward.1} parent=0 // pred_check
    _
  $region55: #{lr_context_forward.1} parent=0 // pred_check_branch
    %408 = sbr.rel (0) target = $region57
  $region56: #{lr_context_forward.1} parent=0 // pred_region
    _
  $region57: #{lr_context_forward.1} parent=0 // pred_fallthru
    _
  // Predicated region
  $region58: #{lr_context_forward.1} parent=0 // pred_check
    _
  $region59: #{lr_context_forward.1} parent=0 // pred_check_branch
    %410 = sbr.rel (0) target = $region61
  $region60: #{lr_context_forward.1} parent=0 // pred_region
    _
  $region61: #{lr_context_forward.1} parent=0 // pred_fallthru
    _
  // Predicated region
  $region62: #{lr_context_forward.1} parent=0 // pred_check
    _
  $region63: #{lr_context_forward.1} parent=0 // pred_check_branch
    %412 = sbr.rel (0) target = $region65
  $region64: #{lr_context_forward.1} parent=0 // pred_region
    _
  $region65: #{lr_context_forward.1} parent=0 // pred_fallthru
    _

</llo_original>
